<compile_context>
chip_gen: v5e
topology: v5e:2x2
jax: 0.10.0
libtpu: 0.0.40
codegen_flags: <defaults>
</compile_context>

<pallas_src>
import functools

import jax
import jax.numpy as jnp
from jax import lax
from jax.experimental import pallas as pl
from jax.experimental.pallas import tpu as pltpu

_EPS = 1e-12          # torch.nn.functional.normalize default eps
_EPS2 = _EPS * _EPS   # rsqrt(max(sumsq, eps^2)) == 1 / max(sqrt(sumsq), eps)


def _eaa_kernel(x_ref, wqk_ref, bqk_ref, wg_ref, wt_ref, bt_ref, o_ref, *,
                bt, n, d):
    """One grid step processes `bt` batch elements (all N tokens).

    x_ref   : (bt*n, C)  bf16  activations, batch*token rows flattened
    wqk_ref : (C, 2d)    bf16  fused [to_query | to_key] weight
    bqk_ref : (1, 2d)    f32   fused [bq | bk] bias
    wg_ref  : (1, d)     f32   w_g^T, pre-multiplied by token_dim**-0.5
    wt_ref  : (2d, Tp)   bf16  fused tail weight [[Proj.W @ final.W], [final.W]]
    bt_ref  : (1, Tp)    f32   fused tail bias    Proj.b @ final.W + final.b
    o_ref   : (bt*n, Tp) f32   output, lane-padded to Tp (multiple of 128)
    """
    # ---- fused query/key projection: single MXU call, f32 accumulation ----
    qk = jnp.dot(x_ref[...], wqk_ref[...],
                 preferred_element_type=jnp.float32) + bqk_ref[...]
    qk = qk.reshape(bt, n, 2 * d)
    q = qk[:, :, :d]
    k = qk[:, :, d:]

    # ---- L2 normalize over feature dim (rsqrt -> EUP slot) ----------------
    q = q * lax.rsqrt(jnp.maximum(jnp.sum(q * q, axis=-1, keepdims=True), _EPS2))
    k = k * lax.rsqrt(jnp.maximum(jnp.sum(k * k, axis=-1, keepdims=True), _EPS2))

    # ---- additive attention global context (no normalized-A intermediate) -
    # qw == (query @ w_g) * scale   (scale folded into wg in the wrapper)
    qw = jnp.sum(q * wg_ref[...], axis=-1, keepdims=True)         # (bt, n, 1)
    s2 = jnp.sum(qw * qw, axis=1, keepdims=True)                  # (bt, 1, 1)
    saq = jnp.sum(qw * q, axis=1, keepdims=True)                  # (bt, 1, d)
    g = saq * lax.rsqrt(jnp.maximum(s2, _EPS2))                   # (bt, 1, d)

    # ---- fused tail: concat([G*k, q]) @ Wt + bt  (one deeper matmul) ------
    h = jnp.concatenate([g * k, q], axis=-1)                      # (bt, n, 2d)
    h = h.reshape(bt * n, 2 * d).astype(wt_ref.dtype)
    out = jnp.dot(h, wt_ref[...],
                  preferred_element_type=jnp.float32) + bt_ref[...]
    o_ref[...] = out.astype(o_ref.dtype)


def _pick_batch_tile(B, N, C, D, budget_bytes=4 << 20):
    """Largest divisor of B whose per-step footprint stays ~a few MiB."""
    per_batch = N * (2 * C + 4 * (6 * D + 2))   # bf16 x row + ~6 f32 (N,D) temps
    bt = max(1, min(B, budget_bytes // max(per_batch, 1)))
    while B % bt:
        bt -= 1
    return bt


def efficient_additive_attention(x, params, *, token_dim, num_heads=1):
    """x: (B, N, in_dims) f32 -> (B, N, token_dim) f32."""
    B, N, C = x.shape
    D = token_dim * num_heads
    T = token_dim
    scale = token_dim ** (-0.5)

    # ---- parameter fusion (done once, outside the kernel) -----------------
    wqk = jnp.concatenate([params["wq"], params["wk"]], axis=1)           # (C, 2D)
    bqk = jnp.concatenate([params["bq"], params["bk"]], axis=1)           # (1, 2D)
    wg = params["wg"] * scale                                             # (1, D)
    w_tail = jnp.concatenate([params["wp"] @ params["wf"], params["wf"]],
                             axis=0)                                      # (2D, T)
    b_tail = params["bp"] @ params["wf"] + params["bf"]                   # (1, T)

    # lane-dense output: pad T up to a multiple of 128 with zero weight cols
    Tp = ((T + 127) // 128) * 128
    if Tp != T:
        w_tail = jnp.pad(w_tail, ((0, 0), (0, Tp - T)))
        b_tail = jnp.pad(b_tail, ((0, 0), (0, Tp - T)))

    # bf16 matmul operands (accumulation stays f32 inside the kernel)
    x2 = x.reshape(B * N, C).astype(jnp.bfloat16)
    wqk = wqk.astype(jnp.bfloat16)
    w_tail = w_tail.astype(jnp.bfloat16)

    Bt = _pick_batch_tile(B, N, C, D)
    rows = Bt * N
    grid = (B // Bt,)

    kernel = functools.partial(_eaa_kernel, bt=Bt, n=N, d=D)

    # Weights/biases: constant index maps (kept double-buffered by the auto
    # pipeline; negligible at these sizes — switch to pl.Buffered(1) /
    # VMEM-scratch preload if C/D grow large).
    def fixed(shape):
        return pl.BlockSpec(shape, lambda g: (0, 0))

    out = pl.pallas_call(
        kernel,
        out_shape=jax.ShapeDtypeStruct((B * N, Tp), x.dtype),
        grid_spec=pltpu.PrefetchScalarGridSpec(
            num_scalar_prefetch=0,
            grid=grid,
            in_specs=[
                pl.BlockSpec((rows, C), lambda g: (g, 0)),   # x (flattened)
                fixed((C, 2 * D)),                           # fused Wq|Wk
                fixed((1, 2 * D)),                           # fused bq|bk
                fixed((1, D)),                               # scaled w_g^T
                fixed((2 * D, Tp)),                          # fused tail weight
                fixed((1, Tp)),                              # fused tail bias
            ],
            out_specs=pl.BlockSpec((rows, Tp), lambda g: (g, 0)),
        ),
        compiler_params=pltpu.CompilerParams(
            dimension_semantics=("parallel",)),
    )(x2, wqk, bqk, wg, w_tail, b_tail)

    out = out.reshape(B, N, Tp)
    return out[..., :T] if Tp != T else out


def make_params(key, in_dims, token_dim, num_heads=1):
    """Deterministic synthetic parameters (PyTorch-Linear-like init shapes)."""
    D = token_dim * num_heads
    ks = jax.random.split(key, 9)

    def lin(kw, kb, fan_in, fan_out):
        bound = 1.0 / (fan_in ** 0.5)
        w = jax.random.uniform(kw, (fan_in, fan_out), jnp.float32, -bound, bound)
        b = jax.random.uniform(kb, (1, fan_out), jnp.float32, -bound, bound)
        return w, b

    wq, bq = lin(ks[0], ks[1], in_dims, D)
    wk, bk = lin(ks[2], ks[3], in_dims, D)
    wg = jax.random.normal(ks[4], (1, D), jnp.float32)   # w_g^T, original (D, 1)
    wp, bp = lin(ks[5], ks[6], D, D)
    wf, bf = lin(ks[7], ks[8], D, token_dim)
    return dict(wq=wq, bq=bq, wk=wk, bk=bk, wg=wg, wp=wp, bp=bp, wf=wf, bf=bf)


def reference(x, p, *, token_dim):
    """Pure-JAX f32 reference mirroring the PyTorch forward exactly."""
    def l2n(v, axis):
        norm = jnp.sqrt(jnp.sum(v * v, axis=axis, keepdims=True))
        return v / jnp.maximum(norm, _EPS)

    scale = token_dim ** (-0.5)
    q = x @ p["wq"] + p["bq"]
    k = x @ p["wk"] + p["bk"]
    q = l2n(q, axis=-1)
    k = l2n(k, axis=-1)
    qw = jnp.sum(q * p["wg"], axis=-1, keepdims=True)     # (B, N, 1)
    A = qw * scale
    A = l2n(A, axis=1)
    G = jnp.sum(A * q, axis=1, keepdims=True)             # (B, 1, D)
    out = (G * k) @ p["wp"] + p["bp"] + q
    out = out @ p["wf"] + p["bf"]
    return out


if __name__ == "__main__":
    B, N, in_dims = 2, 8, 32
    token_dim, num_heads = 32, 1

    key = jax.random.PRNGKey(0)
    kx, kp = jax.random.split(key)
    x = jax.random.normal(kx, (B, N, in_dims), jnp.float32)
    params = make_params(kp, in_dims, token_dim, num_heads)

    out = efficient_additive_attention(x, params, token_dim=token_dim,
                                       num_heads=num_heads)
    out = jax.block_until_ready(out)

    ref = reference(x, params, token_dim=token_dim)
    assert out.shape == (B, N, token_dim), out.shape
    # bf16 MXU operands vs pure-f32 reference -> relaxed tolerance.
    assert jnp.allclose(out, ref, atol=2e-2, rtol=2e-2), (
        "mismatch vs reference, max abs diff = %g"
        % float(jnp.max(jnp.abs(out - ref))))
    print("KERNEL_OK")
</pallas_src>

<mosaic_0001>
module attributes {stable_mosaic.version = 11 : i64} {
  func.func @_eaa_kernel(%arg0: i32, %arg1: memref<16x32xbf16, #tpu.memory_space<vmem>>, %arg2: memref<32x64xbf16, #tpu.memory_space<vmem>>, %arg3: memref<1x64xf32, #tpu.memory_space<vmem>>, %arg4: memref<1x32xf32, #tpu.memory_space<vmem>>, %arg5: memref<64x128xbf16, #tpu.memory_space<vmem>>, %arg6: memref<1x128xf32, #tpu.memory_space<vmem>>, %arg7: memref<16x128xf32, #tpu.memory_space<vmem>>) attributes {dimension_semantics = [#tpu.dimension_semantics<parallel>], iteration_bounds = array<i64: 1>, scalar_prefetch = 0 : i64, scratch_operands = 0 : i64, tpu.core_type = #tpu.core_type<tc>, window_params = [{transform_indices = @transform_0, window_bounds = array<i64: 16, 32>}, {pipeline_mode = #tpu.pipeline_mode<synchronous>, transform_indices = @transform_1, window_bounds = array<i64: 32, 64>}, {pipeline_mode = #tpu.pipeline_mode<synchronous>, transform_indices = @transform_2, window_bounds = array<i64: 1, 64>}, {pipeline_mode = #tpu.pipeline_mode<synchronous>, transform_indices = @transform_3, window_bounds = array<i64: 1, 32>}, {pipeline_mode = #tpu.pipeline_mode<synchronous>, transform_indices = @transform_4, window_bounds = array<i64: 64, 128>}, {pipeline_mode = #tpu.pipeline_mode<synchronous>, transform_indices = @transform_5, window_bounds = array<i64: 1, 128>}, {transform_indices = @transform_6, window_bounds = array<i64: 16, 128>}]} {
    %c0 = arith.constant 0 : index
    %c0_0 = arith.constant 0 : index
    %0 = vector.load %arg1[%c0, %c0_0] : memref<16x32xbf16, #tpu.memory_space<vmem>>, vector<16x32xbf16>
    %c0_1 = arith.constant 0 : index
    %c0_2 = arith.constant 0 : index
    %1 = vector.load %arg2[%c0_1, %c0_2] : memref<32x64xbf16, #tpu.memory_space<vmem>>, vector<32x64xbf16>
    %cst = arith.constant dense<0.000000e+00> : vector<16x64xf32>
    %2 = tpu.matmul %0, %1, %cst {dimension_numbers = #tpu.dot_dimension_numbers<[1], [0], [0], [1], [0, 0, 1, 1], [], []>} : vector<16x32xbf16>, vector<32x64xbf16>, vector<16x64xf32> -> vector<16x64xf32>
    %c0_3 = arith.constant 0 : index
    %c0_4 = arith.constant 0 : index
    %3 = vector.load %arg3[%c0_3, %c0_4] : memref<1x64xf32, #tpu.memory_space<vmem>>, vector<1x64xf32>
    %4 = vector.broadcast %3 : vector<1x64xf32> to vector<16x64xf32>
    %5 = arith.addf %2, %4 : vector<16x64xf32>
    %6 = vector.shape_cast %5 : vector<16x64xf32> to vector<2x8x64xf32>
    %7 = vector.extract_strided_slice %6 {offsets = [0, 0, 0], sizes = [2, 8, 32], strides = [1, 1, 1]} : vector<2x8x64xf32> to vector<2x8x32xf32>
    %8 = vector.extract_strided_slice %6 {offsets = [0, 0, 32], sizes = [2, 8, 32], strides = [1, 1, 1]} : vector<2x8x64xf32> to vector<2x8x32xf32>
    %9 = arith.mulf %7, %7 : vector<2x8x32xf32>
    %cst_5 = arith.constant dense<0.000000e+00> : vector<2x8xf32>
    %10 = vector.multi_reduction <add>, %9, %cst_5 [2] : vector<2x8x32xf32> to vector<2x8xf32>
    %11 = vector.shape_cast %10 : vector<2x8xf32> to vector<2x8x1xf32>
    %cst_6 = arith.constant 1.000000e-24 : f32
    %12 = vector.broadcast %cst_6 : f32 to vector<2x8x1xf32>
    %13 = arith.maximumf %11, %12 : vector<2x8x1xf32>
    %14 = math.rsqrt %13 : vector<2x8x1xf32>
    %15 = vector.broadcast %14 : vector<2x8x1xf32> to vector<2x8x32xf32>
    %16 = arith.mulf %7, %15 : vector<2x8x32xf32>
    %17 = arith.mulf %8, %8 : vector<2x8x32xf32>
    %cst_7 = arith.constant dense<0.000000e+00> : vector<2x8xf32>
    %18 = vector.multi_reduction <add>, %17, %cst_7 [2] : vector<2x8x32xf32> to vector<2x8xf32>
    %19 = vector.shape_cast %18 : vector<2x8xf32> to vector<2x8x1xf32>
    %cst_8 = arith.constant 1.000000e-24 : f32
    %20 = vector.broadcast %cst_8 : f32 to vector<2x8x1xf32>
    %21 = arith.maximumf %19, %20 : vector<2x8x1xf32>
    %22 = math.rsqrt %21 : vector<2x8x1xf32>
    %23 = vector.broadcast %22 : vector<2x8x1xf32> to vector<2x8x32xf32>
    %24 = arith.mulf %8, %23 : vector<2x8x32xf32>
    %c0_9 = arith.constant 0 : index
    %c0_10 = arith.constant 0 : index
    %25 = vector.load %arg4[%c0_9, %c0_10] : memref<1x32xf32, #tpu.memory_space<vmem>>, vector<1x32xf32>
    %26 = vector.shape_cast %25 : vector<1x32xf32> to vector<1x1x32xf32>
    %27 = vector.broadcast %26 : vector<1x1x32xf32> to vector<2x8x32xf32>
    %28 = arith.mulf %16, %27 : vector<2x8x32xf32>
    %cst_11 = arith.constant dense<0.000000e+00> : vector<2x8xf32>
    %29 = vector.multi_reduction <add>, %28, %cst_11 [2] : vector<2x8x32xf32> to vector<2x8xf32>
    %30 = vector.shape_cast %29 : vector<2x8xf32> to vector<2x8x1xf32>
    %31 = arith.mulf %30, %30 : vector<2x8x1xf32>
    %cst_12 = arith.constant dense<0.000000e+00> : vector<2x1xf32>
    %32 = vector.multi_reduction <add>, %31, %cst_12 [1] : vector<2x8x1xf32> to vector<2x1xf32>
    %33 = vector.shape_cast %32 : vector<2x1xf32> to vector<2x1x1xf32>
    %34 = vector.broadcast %30 : vector<2x8x1xf32> to vector<2x8x32xf32>
    %35 = arith.mulf %34, %16 : vector<2x8x32xf32>
    %cst_13 = arith.constant dense<0.000000e+00> : vector<2x32xf32>
    %36 = vector.multi_reduction <add>, %35, %cst_13 [1] : vector<2x8x32xf32> to vector<2x32xf32>
    %37 = vector.shape_cast %36 : vector<2x32xf32> to vector<2x1x32xf32>
    %cst_14 = arith.constant 1.000000e-24 : f32
    %38 = vector.broadcast %cst_14 : f32 to vector<2x1x1xf32>
    %39 = arith.maximumf %33, %38 : vector<2x1x1xf32>
    %40 = math.rsqrt %39 : vector<2x1x1xf32>
    %41 = vector.broadcast %40 : vector<2x1x1xf32> to vector<2x1x32xf32>
    %42 = arith.mulf %37, %41 : vector<2x1x32xf32>
    %43 = vector.broadcast %42 : vector<2x1x32xf32> to vector<2x8x32xf32>
    %44 = arith.mulf %43, %24 : vector<2x8x32xf32>
    %45 = tpu.concatenate %44, %16 in 2 : vector<2x8x32xf32>, vector<2x8x32xf32> -> vector<2x8x64xf32>
    %46 = vector.shape_cast %45 : vector<2x8x64xf32> to vector<16x64xf32>
    %47 = arith.truncf %46 : vector<16x64xf32> to vector<16x64xbf16>
    %c0_15 = arith.constant 0 : index
    %c0_16 = arith.constant 0 : index
    %48 = vector.load %arg5[%c0_15, %c0_16] : memref<64x128xbf16, #tpu.memory_space<vmem>>, vector<64x128xbf16>
    %cst_17 = arith.constant dense<0.000000e+00> : vector<16x128xf32>
    %49 = tpu.matmul %47, %48, %cst_17 {dimension_numbers = #tpu.dot_dimension_numbers<[1], [0], [0], [1], [0, 0, 1, 1], [], []>} : vector<16x64xbf16>, vector<64x128xbf16>, vector<16x128xf32> -> vector<16x128xf32>
    %c0_18 = arith.constant 0 : index
    %c0_19 = arith.constant 0 : index
    %50 = vector.load %arg6[%c0_18, %c0_19] : memref<1x128xf32, #tpu.memory_space<vmem>>, vector<1x128xf32>
    %51 = vector.broadcast %50 : vector<1x128xf32> to vector<16x128xf32>
    %52 = arith.addf %49, %51 : vector<16x128xf32>
    %c0_20 = arith.constant 0 : index
    %c0_21 = arith.constant 0 : index
    %53 = vector.load %arg7[%c0_20, %c0_21] : memref<16x128xf32, #tpu.memory_space<vmem>>, vector<16x128xf32>
    tpu.vector_store %arg7[%c0_20, %c0_21], %52 {strides = array<i32>} : memref<16x128xf32, #tpu.memory_space<vmem>>, vector<16x128xf32>,
    return
  }
  func.func @transform_0(%arg0: i32) -> (i32, i32) {
    %c0_i32 = arith.constant 0 : i32
    %c0_i32_0 = arith.constant 0 : i32
    return %arg0, %c0_i32 : i32, i32
  }
  func.func @transform_1(%arg0: i32) -> (i32, i32) {
    %c0_i32 = arith.constant 0 : i32
    %c0_i32_0 = arith.constant 0 : i32
    %c0_i32_1 = arith.constant 0 : i32
    return %c0_i32, %c0_i32_0 : i32, i32
  }
  func.func @transform_2(%arg0: i32) -> (i32, i32) {
    %c0_i32 = arith.constant 0 : i32
    %c0_i32_0 = arith.constant 0 : i32
    %c0_i32_1 = arith.constant 0 : i32
    return %c0_i32, %c0_i32_0 : i32, i32
  }
  func.func @transform_3(%arg0: i32) -> (i32, i32) {
    %c0_i32 = arith.constant 0 : i32
    %c0_i32_0 = arith.constant 0 : i32
    %c0_i32_1 = arith.constant 0 : i32
    return %c0_i32, %c0_i32_0 : i32, i32
  }
  func.func @transform_4(%arg0: i32) -> (i32, i32) {
    %c0_i32 = arith.constant 0 : i32
    %c0_i32_0 = arith.constant 0 : i32
    %c0_i32_1 = arith.constant 0 : i32
    return %c0_i32, %c0_i32_0 : i32, i32
  }
  func.func @transform_5(%arg0: i32) -> (i32, i32) {
    %c0_i32 = arith.constant 0 : i32
    %c0_i32_0 = arith.constant 0 : i32
    %c0_i32_1 = arith.constant 0 : i32
    return %c0_i32, %c0_i32_0 : i32, i32
  }
  func.func @transform_6(%arg0: i32) -> (i32, i32) {
    %c0_i32 = arith.constant 0 : i32
    %c0_i32_0 = arith.constant 0 : i32
    return %arg0, %c0_i32 : i32, i32
  }
}

</mosaic_0001>

<llo_original>
// kernel: tpu_custom_call.1
$region0: #{tpu_custom_call.1}
  #allocation0 [shape = 'u32[]', space=smem, size = 0x4, offset = 0x4, fixed_abs, tag = 'smem constant byte address 0x4 - core index']
  #allocation1 [shape = 'u32[72,128]{1,0:T(1,128)}', space=vmem, size = 0x9000, scoped, tag = 'internal scratch']
  %s0 = inlined_call_operand.hbm [shape: bf16[16,32], index: 0, kind: input, shape index: {}]
  %s1 = inlined_call_operand.hbm [shape: bf16[32,64], index: 1, kind: input, shape index: {}]
  %s2 = inlined_call_operand.vmem [shape: f32[1,64], index: 2, kind: input, shape index: {}]
  %s3 = inlined_call_operand.vmem [shape: f32[1,32], index: 3, kind: input, shape index: {}]
  %s4 = inlined_call_operand.hbm [shape: bf16[64,128], index: 4, kind: input, shape index: {}]
  %s5 = inlined_call_operand.vmem [shape: f32[1,128], index: 5, kind: input, shape index: {}]
  %s6 = inlined_call_operand.hbm [shape: f32[16,128], index: 6, kind: output, shape index: {}]
  %s7 = sld [smem:[#allocation0]]
  $region46: #{tpu_custom_call.1} parent=0
    _
  %s9 = ssub.s32 1, %s7
  %s10 = scalar_select 0, %s9, %s7
  $region1: #{tpu_custom_call.1} parent=0
    #allocation2 [shape = 'u8[4096]{0}', space=vmem, size = 0x1000, scoped, tag = 'input window, operand 0, single buffered']
    #allocation3 [shape = 's32[1]{0}', space=sflag, size = 0x4, scoped, tag = 'scoped memory for tpu_custom_call.1']
    #allocation4 [shape = 's32[1]{0}', space=sflag, size = 0x4, scoped, tag = 'scoped memory for tpu_custom_call.1']
    #allocation5 [shape = 'u8[8192]{0}', space=vmem, size = 0x2000, scoped, tag = 'input window, operand 1, single buffered']
    #allocation6 [shape = 's32[1]{0}', space=sflag, size = 0x4, scoped, tag = 'scoped memory for tpu_custom_call.1']
    #allocation7 [shape = 'u8[16384]{0}', space=vmem, size = 0x4000, scoped, tag = 'input window, operand 4, single buffered']
    #allocation8 [shape = 'u8[8192]{0}', space=vmem, size = 0x2000, scoped, tag = 'output window, operand 0, single buffered']
    %11 = vsyncpa [#allocation3], 0
    %12 = vsyncpa [#allocation6], 0
    %13 = vsyncpa [#allocation4], 0
    // Predicated region
    $region2: #{tpu_custom_call.1} parent=1 // pred_check
      _
    $region3: #{tpu_custom_call.1} parent=1 // pred_check_branch
      %15 = sbr.rel (0) target = $region5
    $region4: #{tpu_custom_call.1} parent=1 // pred_region
      %17 = vsyncadd [#allocation3], 0
      %s18 = sshll.u32 %s0, 4
      %s19 = int_to_ptr.hbm [resolvable:$true] %s18
      %s20 = sshll.u32 [#allocation2], 4
      %s21 = int_to_ptr.vmem [resolvable:$true] %s20
      %26 = dma.hbm_to_vmem [thread:$0]  %s19, 128, %s21, [#allocation3], 64, 64, 4
    $region5: #{tpu_custom_call.1} parent=1 // pred_fallthru
      _
    // Predicated region
    $region6: #{tpu_custom_call.1} parent=1 // pred_check
      _
    $region7: #{tpu_custom_call.1} parent=1 // pred_check_branch
      %28 = sbr.rel (0) target = $region9
    $region8: #{tpu_custom_call.1} parent=1 // pred_region
      %30 = vsyncadd [#allocation6], 0
      %s31 = sshll.u32 %s1, 4
      %s32 = int_to_ptr.hbm [resolvable:$true] %s31
      %s33 = sshll.u32 [#allocation5], 4
      %s34 = int_to_ptr.vmem [resolvable:$true] %s33
      %39 = dma.hbm_to_vmem [thread:$0]  %s32, 256, %s34, [#allocation6], 64, 64, 4
    $region9: #{tpu_custom_call.1} parent=1 // pred_fallthru
      _
    // Predicated region
    $region10: #{tpu_custom_call.1} parent=1 // pred_check
      _
    $region11: #{tpu_custom_call.1} parent=1 // pred_check_branch
      %41 = sbr.rel (0) target = $region13
    $region12: #{tpu_custom_call.1} parent=1 // pred_region
      _
    $region13: #{tpu_custom_call.1} parent=1 // pred_fallthru
      _
    // Predicated region
    $region14: #{tpu_custom_call.1} parent=1 // pred_check
      _
    $region15: #{tpu_custom_call.1} parent=1 // pred_check_branch
      %43 = sbr.rel (0) target = $region17
    $region16: #{tpu_custom_call.1} parent=1 // pred_region
      _
    $region17: #{tpu_custom_call.1} parent=1 // pred_fallthru
      _
    // Predicated region
    $region18: #{tpu_custom_call.1} parent=1 // pred_check
      _
    $region19: #{tpu_custom_call.1} parent=1 // pred_check_branch
      %45 = sbr.rel (0) target = $region21
    $region20: #{tpu_custom_call.1} parent=1 // pred_region
      %47 = vsyncadd [#allocation6], 0
      %s48 = sshll.u32 %s4, 4
      %s49 = int_to_ptr.hbm [resolvable:$true] %s48
      %s50 = sshll.u32 [#allocation7], 4
      %s51 = int_to_ptr.vmem [resolvable:$true] %s50
      %56 = dma.hbm_to_vmem [thread:$0]  %s49, 512, %s51, [#allocation6], 64, 64, 4
    $region21: #{tpu_custom_call.1} parent=1 // pred_fallthru
      _
    // Predicated region
    $region22: #{tpu_custom_call.1} parent=1 // pred_check
      _
    $region23: #{tpu_custom_call.1} parent=1 // pred_check_branch
      %58 = sbr.rel (0) target = $region25
    $region24: #{tpu_custom_call.1} parent=1 // pred_region
      _
    $region25: #{tpu_custom_call.1} parent=1 // pred_fallthru
      _
    // Predicated region
    $region26: #{tpu_custom_call.1} parent=1 // pred_check
      _
    $region27: #{tpu_custom_call.1} parent=1 // pred_check_branch
      %60 = sbr.rel (0) target = $region29
    $region28: #{tpu_custom_call.1} parent=1 // pred_region
      %62 = dma.done [#allocation3], 128
    $region29: #{tpu_custom_call.1} parent=1 // pred_fallthru
      _
    // Predicated region
    $region30: #{tpu_custom_call.1} parent=1 // pred_check
      _
    $region31: #{tpu_custom_call.1} parent=1 // pred_check_branch
      %64 = sbr.rel (0) target = $region33
    $region32: #{tpu_custom_call.1} parent=1 // pred_region
      %66 = dma.done [#allocation6], 256
    $region33: #{tpu_custom_call.1} parent=1 // pred_fallthru
      _
    // Predicated region
    $region34: #{tpu_custom_call.1} parent=1 // pred_check
      _
    $region35: #{tpu_custom_call.1} parent=1 // pred_check_branch
      %68 = sbr.rel (0) target = $region37
    $region36: #{tpu_custom_call.1} parent=1 // pred_region
      %70 = dma.done [#allocation6], 512
    $region37: #{tpu_custom_call.1} parent=1 // pred_fallthru
      _
    %v72 = vld [vmem:[#allocation2] sm:$0xf]
    %v73 = vld [vmem:[#allocation2 + $0x4] sm:$0xf]
    %v74 = vld [vmem:[#allocation5] sm:$0xf]
    %v75 = vld [vmem:[#allocation5 + $0x4] sm:$0xf]
    %v76 = vld [vmem:[#allocation5 + $0x8] sm:$0xf]
    %v77 = vld [vmem:[#allocation5 + $0xc] sm:$0xf]
    %v78 = vld [vmem:[%s2] sm:$0x1]
    %v80 = vperm.slane %v78, 0
    %v84 = vunpack.c.l.b16 %v72
    %v85 = vunpack.c.l.b16 %v73
    %v86 = vpack.c.b16 %v85, %v84
    %v91 = vunpack.c.l.b16 %v74
    %v92 = vunpack.c.l.b16 %v75
    %v93 = vunpack.c.l.b16 %v76
    %v94 = vunpack.c.l.b16 %v77
    %v95 = vpack.c.b16 %v92, %v91
    %v96 = vpack.c.b16 %v94, %v93
    %vm99 = vcmask 261120
    %v101 = vsel %vm99, %v86, 0
    %103 = vmatpush.bf16.msra.mxu0 0
    %104 = vmatpush.bf16.msra.mxu0 0
    %105 = vmatpush.bf16.msra.mxu0 0
    %106 = vmatpush.bf16.msra.mxu0 0
    %107 = vmatpush.bf16.msra.mxu0 0
    %108 = vmatpush.bf16.msra.mxu0 0
    %109 = vmatpush.bf16.msra.mxu0 %v96
    %110 = vmatpush.bf16.msra.mxu0 %v95
    %111 = vmatmul.bf16.gmra.mxu0 %v101
    %v112 = vpop.f32.mrf.mxu0
    %v113 = vadd.f32 %v80, %v112
    %v114 = vpop.f32.mrf.mxu0
    %v115 = vadd.f32 %v80, %v114
    %116 = vdwg.mxu0
    %v117 = vmul.f32 %v113, %v113
    %v118 = vmul.f32 %v115, %v115
    %v119 = vsel %vm99, %v117, 0.0
    %120 = vadd.xlane.f32.xlu0 %v119
    %v121 = vpop.xlane.xlu0 %120
    %v122 = vsel %vm99, %v118, 0.0
    %123 = vadd.xlane.f32.xlu0 %v122
    %v124 = vpop.xlane.xlu0 %123
    %v125 = vmax.f32 %v121, 1e-24
    %v126 = vmax.f32 %v124, 1e-24
    %v127 = vrsqrt.pop %v125
    %v128 = vmul.f32 %v127, %v125
    %v129 = vmul.f32 %v128, %v127
    %v130 = vmul.f32 0.5, %v129
    %v131 = vsub.f32 1.5, %v130
    %v132 = vmul.f32 %v127, %v131
    %vm133 = vweird.f32 %v125
    %vm134 = vweird.f32 %v127
    %vm135 = vmor %vm133, %vm134
    %v136 = vsel %vm135, %v127, %v132
    %v137 = vrsqrt.pop %v126
    %v138 = vmul.f32 %v137, %v126
    %v139 = vmul.f32 %v138, %v137
    %v140 = vmul.f32 0.5, %v139
    %v141 = vsub.f32 1.5, %v140
    %v142 = vmul.f32 %v137, %v141
    %vm143 = vweird.f32 %v126
    %vm144 = vweird.f32 %v137
    %vm145 = vmor %vm143, %vm144
    %v146 = vsel %vm145, %v137, %v142
    %v147 = vmul.f32 %v113, %v136
    %v148 = vmul.f32 %v115, %v146
    %151 = vrot.lane.b32.xlu0 %v117, 96
    %v152 = vpop.permute.xlu0 %151
    %153 = vrot.lane.b32.xlu0 %v118, 96
    %v154 = vpop.permute.xlu0 %153
    %v157 = vsel %vm99, %v152, 0.0
    %158 = vadd.xlane.f32.xlu0 %v157
    %v159 = vpop.xlane.xlu0 %158
    %v160 = vsel %vm99, %v154, 0.0
    %161 = vadd.xlane.f32.xlu0 %v160
    %v162 = vpop.xlane.xlu0 %161
    %v163 = vmax.f32 %v159, 1e-24
    %v164 = vmax.f32 %v162, 1e-24
    %v165 = vrsqrt.pop %v163
    %v166 = vmul.f32 %v165, %v163
    %v167 = vmul.f32 %v166, %v165
    %v168 = vmul.f32 0.5, %v167
    %v169 = vsub.f32 1.5, %v168
    %v170 = vmul.f32 %v165, %v169
    %vm171 = vweird.f32 %v163
    %vm172 = vweird.f32 %v165
    %vm173 = vmor %vm171, %vm172
    %v174 = vsel %vm173, %v165, %v170
    %v175 = vrsqrt.pop %v164
    %v176 = vmul.f32 %v175, %v164
    %v177 = vmul.f32 %v176, %v175
    %v178 = vmul.f32 0.5, %v177
    %v179 = vsub.f32 1.5, %v178
    %v180 = vmul.f32 %v175, %v179
    %vm181 = vweird.f32 %v164
    %vm182 = vweird.f32 %v175
    %vm183 = vmor %vm181, %vm182
    %v184 = vsel %vm183, %v175, %v180
    %v185 = vmul.f32 %v113, %v174
    %v186 = vmul.f32 %v115, %v184
    %v187 = vld [vmem:[%s3] sm:$0x1]
    %v189 = vperm.slane %v187, 0
    %v191 = vmul.f32 %v147, %v189
    %v192 = vmul.f32 %v148, %v189
    %v193 = vsel %vm99, %v191, 0.0
    %194 = vadd.xlane.f32.xlu0 %v193
    %v195 = vpop.xlane.xlu0 %194
    %v196 = vsel %vm99, %v192, 0.0
    %197 = vadd.xlane.f32.xlu0 %v196
    %v198 = vpop.xlane.xlu0 %197
    %v199 = vmul.f32 %v195, %v195
    %v200 = vmul.f32 %v198, %v198
    %v201 = vrot.slane %v199, 4
    %v202 = vadd.f32 %v199, %v201
    %v203 = vrot.slane %v202, 2
    %v204 = vadd.f32 %v202, %v203
    %v205 = vrot.slane %v204, 1
    %v206 = vadd.f32 %v204, %v205
    %v207 = vrot.slane %v200, 4
    %v208 = vadd.f32 %v200, %v207
    %v209 = vrot.slane %v208, 2
    %v210 = vadd.f32 %v208, %v209
    %v211 = vrot.slane %v210, 1
    %v212 = vadd.f32 %v210, %v211
    %v213 = vmul.f32 %v195, %v147
    %v214 = vmul.f32 %v198, %v148
    %v215 = vsel %vm99, %v213, 0.0
    %v216 = vrot.slane %v215, 4
    %v217 = vadd.f32 %v215, %v216
    %v218 = vrot.slane %v217, 2
    %v219 = vadd.f32 %v217, %v218
    %v220 = vrot.slane %v219, 1
    %v221 = vadd.f32 %v219, %v220
    %v222 = vsel %vm99, %v214, 0.0
    %v223 = vrot.slane %v222, 4
    %v224 = vadd.f32 %v222, %v223
    %v225 = vrot.slane %v224, 2
    %v226 = vadd.f32 %v224, %v225
    %v227 = vrot.slane %v226, 1
    %v228 = vadd.f32 %v226, %v227
    %v229 = vmax.f32 %v206, 1e-24
    %v230 = vmax.f32 %v212, 1e-24
    %v231 = vrsqrt.pop %v229
    %v232 = vmul.f32 %v231, %v229
    %v233 = vmul.f32 %v232, %v231
    %v234 = vmul.f32 0.5, %v233
    %v235 = vsub.f32 1.5, %v234
    %v236 = vmul.f32 %v231, %v235
    %vm237 = vweird.f32 %v229
    %vm238 = vweird.f32 %v231
    %vm239 = vmor %vm237, %vm238
    %v240 = vsel %vm239, %v231, %v236
    %v241 = vrsqrt.pop %v230
    %v242 = vmul.f32 %v241, %v230
    %v243 = vmul.f32 %v242, %v241
    %v244 = vmul.f32 0.5, %v243
    %v245 = vsub.f32 1.5, %v244
    %v246 = vmul.f32 %v241, %v245
    %vm247 = vweird.f32 %v230
    %vm248 = vweird.f32 %v241
    %vm249 = vmor %vm247, %vm248
    %v250 = vsel %vm249, %v241, %v246
    %v251 = vmul.f32 %v221, %v240
    %v252 = vmul.f32 %v228, %v250
    %255 = vrot.lane.b32.xlu0 %v185, 96
    %v256 = vpop.permute.xlu0 %255
    %257 = vrot.lane.b32.xlu0 %v186, 96
    %v258 = vpop.permute.xlu0 %257
    %v261 = vmul.f32 %v251, %v256
    %v262 = vmul.f32 %v252, %v258
    %265 = vrot.lane.b32.xlu0 %v147, 32
    %v266 = vpop.permute.xlu0 %265
    %267 = vrot.lane.b32.xlu0 %v148, 32
    %v268 = vpop.permute.xlu0 %267
    %v271 = vsel %vm99, %v261, %v266
    %v272 = vsel %vm99, %v262, %v268
    %v273 = vpack.c.bf16 %v272, %v271
    %v274 = vld [vmem:[#allocation7] sm:$0xf]
    %v275 = vld [vmem:[#allocation7 + $0x4] sm:$0xf]
    %v276 = vld [vmem:[#allocation7 + $0x8] sm:$0xf]
    %v277 = vld [vmem:[#allocation7 + $0xc] sm:$0xf]
    %v278 = vld [vmem:[#allocation7 + $0x10] sm:$0xf]
    %v279 = vld [vmem:[#allocation7 + $0x14] sm:$0xf]
    %v280 = vld [vmem:[#allocation7 + $0x18] sm:$0xf]
    %v281 = vld [vmem:[#allocation7 + $0x1c] sm:$0xf]
    %v282 = vld [vmem:[%s5] sm:$0x1]
    %v284 = vperm.slane %v282, 0
    %v294 = vunpack.c.l.b16 %v274
    %v295 = vunpack.c.l.b16 %v275
    %v296 = vunpack.c.l.b16 %v276
    %v297 = vunpack.c.l.b16 %v277
    %v298 = vunpack.c.l.b16 %v278
    %v299 = vunpack.c.l.b16 %v279
    %v300 = vunpack.c.l.b16 %v280
    %v301 = vunpack.c.l.b16 %v281
    %v302 = vpack.c.b16 %v295, %v294
    %v303 = vpack.c.b16 %v297, %v296
    %v304 = vpack.c.b16 %v299, %v298
    %v305 = vpack.c.b16 %v301, %v300
    %vm310 = vcmask 523264
    %v312 = vsel %vm310, %v273, 0
    %314 = vmatpush.bf16.msra.mxu0 0
    %315 = vmatpush.bf16.msra.mxu0 0
    %316 = vmatpush.bf16.msra.mxu0 0
    %317 = vmatpush.bf16.msra.mxu0 0
    %318 = vmatpush.bf16.msra.mxu0 %v305
    %319 = vmatpush.bf16.msra.mxu0 %v304
    %320 = vmatpush.bf16.msra.mxu0 %v303
    %321 = vmatpush.bf16.msra.mxu0 %v302
    %322 = vmatmul.bf16.gmra.mxu0 %v312
    %v323 = vpop.f32.mrf.mxu0
    %v324 = vadd.f32 %v284, %v323
    %v325 = vpop.f32.mrf.mxu0
    %v326 = vadd.f32 %v284, %v325
    %327 = vdwg.mxu0
    %328 = vst [vmem:[#allocation8] sm:$0xff] %v324
    %329 = vst [vmem:[#allocation8 + $0x8] sm:$0xff] %v326
    // Predicated region
    $region38: #{tpu_custom_call.1} parent=1 // pred_check
      _
    $region39: #{tpu_custom_call.1} parent=1 // pred_check_branch
      %331 = sbr.rel (0) target = $region41
    $region40: #{tpu_custom_call.1} parent=1 // pred_region
      %333 = vsyncadd [#allocation4], 0
      %s334 = sshll.u32 [#allocation8], 4
      %s335 = int_to_ptr.vmem [resolvable:$true] %s334
      %s336 = sshll.u32 %s6, 4
      %s337 = int_to_ptr.hbm [resolvable:$true] %s336
      %342 = dma.vmem_to_hbm [thread:$0]  %s335, 256, %s337, [#allocation4], 128, 128, 8
    $region41: #{tpu_custom_call.1} parent=1 // pred_fallthru
      _
    // Predicated region
    $region42: #{tpu_custom_call.1} parent=1 // pred_check
      _
    $region43: #{tpu_custom_call.1} parent=1 // pred_check_branch
      %344 = sbr.rel (0) target = $region45
    $region44: #{tpu_custom_call.1} parent=1 // pred_region
      %346 = dma.done [#allocation4], 256
    $region45: #{tpu_custom_call.1} parent=1 // pred_fallthru
      _
    %347 = vsyncpa [#allocation3], 1
    %348 = vsyncpa [#allocation6], 1
    %349 = vsyncpa [#allocation4], 1

</llo_original>
